<compile_context>
chip_gen: v7x
topology: tpu7x:2x2x1
jax: 0.10.0
libtpu: 0.0.40
codegen_flags: <defaults>
</compile_context>

<pallas_src>
import functools

import jax
import jax.numpy as jnp
from jax.experimental import pallas as pl
from jax.experimental.pallas import tpu as pltpu


def _round_up(x, m):
    return ((x + m - 1) // m) * m


def _cdiv(a, b):
    return (a + b - 1) // b


def _fused_mlp_kernel(*refs, num_layers, compute_dtype):
    """refs = (x_ref, w0, b0, w1, b1, ..., w_{L-1}, b_{L-1}, o_ref).

    x_ref: [TILE_N, F0] f32 (cast to compute dtype in-kernel),
    w_i:   [F_i, F_{i+1}] compute dtype (bf16),
    b_i:   [1, F_{i+1}] f32,
    o_ref: [TILE_N, F_L] f32.
    """
    x_ref = refs[0]
    o_ref = refs[-1]
    wb = refs[1:-1]

    h = x_ref[...].astype(compute_dtype)        # in-kernel cast: x streams from HBM as-is
    for li in range(num_layers):
        w = wb[2 * li][...]
        b = wb[2 * li + 1][...]                 # (1, Fout) f32, broadcasts over rows
        y = jnp.dot(h, w, preferred_element_type=jnp.float32) + b
        if li < num_layers - 1:
            y = jnp.maximum(y, 0.0)             # ReLU in f32
            # Dropout: identity (eval mode).
            h = y.astype(compute_dtype)         # back to MXU compute dtype
        else:
            h = y
    o_ref[...] = h.astype(o_ref.dtype)


def prepare_plain_mlp_params(params, compute_dtype=jnp.bfloat16):
    """One-time param prep (hoisted out of the per-call forward).

    params: list of (w [Fin, Fout], b [Fout] or [1, Fout]) float32
            (w pre-transposed vs torch's [out, in]).
    Returns list of (bf16 w, f32 (1, Fout) b) ready for the kernel.
    """
    prepared = []
    for w, b in params:
        prepared.append((jnp.asarray(w, compute_dtype),
                         jnp.asarray(b, jnp.float32).reshape(1, -1)))
    return prepared


def plain_mlp_forward(prepared_params, x, *, tile_rows=512):
    """Fused PlainMLP forward (eval mode).

    prepared_params: output of prepare_plain_mlp_params.
    x: [N, in_channels] float32.  Returns [N, out_channels] float32.
    """
    N, f_in = x.shape
    num_layers = len(prepared_params)
    dims = [f_in] + [w.shape[1] for w, _ in prepared_params]
    out_channels = dims[-1]
    compute_dtype = prepared_params[0][0].dtype

    # --- Row tiling: multiple of 8 sublanes, adaptive to N, >=2 tiles when N allows
    #     so v7x's two TensorCores both get work.
    n8 = _round_up(max(N, 1), 8)
    tile_cap = max(8, _round_up(tile_rows, 8))
    if n8 <= tile_cap:
        tile_n = _round_up(_cdiv(n8, 2), 8) if n8 >= 16 else n8
    else:
        tile_n = tile_cap
    n_pad = _round_up(n8, tile_n)
    grid = (n_pad // tile_n,)

    # Pad rows only if needed; feature dims are never padded.
    if n_pad != N:
        x_in = jnp.zeros((n_pad, f_in), x.dtype).at[:N, :].set(x)
    else:
        x_in = x

    ops = [x_in]
    for w, b in prepared_params:
        ops += [w, b]

    # --- BlockSpecs: x/out tiled over rows; weights/biases resident (constant
    #     index_map) and single-buffered (double-buffering a constant block is waste).
    in_specs = [pl.BlockSpec((tile_n, f_in), lambda i: (i, 0))]
    for li in range(num_layers):
        fi, fo = dims[li], dims[li + 1]
        in_specs.append(pl.BlockSpec((fi, fo), lambda i: (0, 0),
                                     pipeline_mode=pl.Buffered(1)))
        in_specs.append(pl.BlockSpec((1, fo), lambda i: (0, 0),
                                     pipeline_mode=pl.Buffered(1)))
    out_spec = pl.BlockSpec((tile_n, out_channels), lambda i: (i, 0))

    # --- VMEM budget: resident params (1 buffer) + double-buffered x/out tiles
    #     + per-layer activation working set; keep well under v7x's 64 MiB.
    param_bytes = sum(int(o.size) * o.dtype.itemsize for o in ops[1:])
    x_tile_bytes = 2 * tile_n * f_in * x.dtype.itemsize
    out_tile_bytes = 2 * tile_n * out_channels * 4
    act_bytes = 2 * 4 * tile_n * sum(dims)      # f32 + compute-dtype working copies (upper bound)
    footprint = param_bytes + x_tile_bytes + out_tile_bytes + act_bytes
    vmem_limit = int(min(56 << 20, max(8 << 20, footprint + footprint // 2 + (2 << 20))))

    # --- Cost estimate from real (unpadded) dims.
    flops = int(2 * N * sum(dims[i] * dims[i + 1] for i in range(num_layers)))
    bytes_accessed = int(N * f_in * x.dtype.itemsize + param_bytes + N * out_channels * 4)

    kernel = functools.partial(_fused_mlp_kernel, num_layers=num_layers,
                               compute_dtype=compute_dtype)
    out = pl.pallas_call(
        kernel,
        out_shape=jax.ShapeDtypeStruct((n_pad, out_channels), jnp.float32),
        grid_spec=pltpu.PrefetchScalarGridSpec(
            num_scalar_prefetch=0,
            grid=grid,
            in_specs=in_specs,
            out_specs=out_spec,
        ),
        compiler_params=pltpu.CompilerParams(
            dimension_semantics=("parallel",),     # shards row tiles across v7x TCs
            vmem_limit_bytes=vmem_limit,
        ),
        cost_estimate=pl.CostEstimate(
            flops=flops, transcendentals=0, bytes_accessed=bytes_accessed),
    )(*ops)
    return out[:N] if n_pad != N else out


def init_plain_mlp_params(key, in_channels, hidden_channels, out_channels, num_layers):
    """Deterministic init mirroring nn.Linear's default (Kaiming-uniform-ish).

    Weights stored pre-transposed as [fan_in, fan_out]; bias as [1, fan_out]."""
    dims = [in_channels] + [hidden_channels] * (num_layers - 1) + [out_channels]
    params = []
    for li in range(num_layers):
        fan_in, fan_out = dims[li], dims[li + 1]
        key, kw, kb = jax.random.split(key, 3)
        bound = 1.0 / jnp.sqrt(jnp.float32(fan_in))
        w = jax.random.uniform(kw, (fan_in, fan_out), jnp.float32, -bound, bound)
        b = jax.random.uniform(kb, (1, fan_out), jnp.float32, -bound, bound)
        params.append((w, b))
    return params


if __name__ == "__main__":
    in_channels = 32
    hidden_channels = 64
    out_channels = 16
    num_layers = 3

    key = jax.random.PRNGKey(0)
    key, kx1, kx2 = jax.random.split(key, 3)

    raw_params = init_plain_mlp_params(
        key, in_channels, hidden_channels, out_channels, num_layers)
    params = prepare_plain_mlp_params(raw_params)   # one-time prep (hoisted out of forward)

    # Pure-JAX reference with the same bf16-operand / f32-accumulate arithmetic.
    def ref_forward(ps, xin, cdt=jnp.bfloat16):
        h = xin.astype(cdt)
        for li, (w, b) in enumerate(ps):
            y = jnp.dot(h, w.astype(cdt), preferred_element_type=jnp.float32) + b
            if li < len(ps) - 1:
                y = jnp.maximum(y, 0.0)
                h = y.astype(cdt)
            else:
                h = y
        return h

    # Case 1: tiny batch (single row tile).
    x_small = jax.random.normal(kx1, (8, in_channels), jnp.float32)
    out_small = jax.block_until_ready(plain_mlp_forward(params, x_small))
    assert out_small.shape == (8, out_channels)
    ref_small = ref_forward(raw_params, x_small)
    assert jnp.allclose(out_small, ref_small, atol=1e-2, rtol=1e-2), \
        float(jnp.max(jnp.abs(out_small - ref_small)))

    # Case 2: unaligned batch (exercises multi-tile grid + row padding + slice).
    x_big = jax.random.normal(kx2, (50, in_channels), jnp.float32)
    out_big = jax.block_until_ready(plain_mlp_forward(params, x_big))
    assert out_big.shape == (50, out_channels)
    ref_big = ref_forward(raw_params, x_big)
    assert jnp.allclose(out_big, ref_big, atol=1e-2, rtol=1e-2), \
        float(jnp.max(jnp.abs(out_big - ref_big)))

    print("KERNEL_OK")
</pallas_src>

<mosaic_0001>
module attributes {stable_mosaic.version = 11 : i64} {
  func.func @_fused_mlp_kernel(%arg0: i32, %arg1: memref<8x32xf32, #tpu.memory_space<vmem>>, %arg2: memref<32x64xbf16, #tpu.memory_space<vmem>>, %arg3: memref<1x64xf32, #tpu.memory_space<vmem>>, %arg4: memref<64x64xbf16, #tpu.memory_space<vmem>>, %arg5: memref<1x64xf32, #tpu.memory_space<vmem>>, %arg6: memref<64x16xbf16, #tpu.memory_space<vmem>>, %arg7: memref<1x16xf32, #tpu.memory_space<vmem>>, %arg8: memref<8x16xf32, #tpu.memory_space<vmem>>) attributes {dimension_semantics = [#tpu.dimension_semantics<parallel>], iteration_bounds = array<i64: 1>, scalar_prefetch = 0 : i64, scratch_operands = 0 : i64, tpu.core_type = #tpu.core_type<tc>, window_params = [{transform_indices = @transform_0, window_bounds = array<i64: 8, 32>}, {pipeline_mode = #tpu.pipeline_mode<synchronous>, transform_indices = @transform_1, window_bounds = array<i64: 32, 64>}, {pipeline_mode = #tpu.pipeline_mode<synchronous>, transform_indices = @transform_2, window_bounds = array<i64: 1, 64>}, {pipeline_mode = #tpu.pipeline_mode<synchronous>, transform_indices = @transform_3, window_bounds = array<i64: 64, 64>}, {pipeline_mode = #tpu.pipeline_mode<synchronous>, transform_indices = @transform_4, window_bounds = array<i64: 1, 64>}, {pipeline_mode = #tpu.pipeline_mode<synchronous>, transform_indices = @transform_5, window_bounds = array<i64: 64, 16>}, {pipeline_mode = #tpu.pipeline_mode<synchronous>, transform_indices = @transform_6, window_bounds = array<i64: 1, 16>}, {transform_indices = @transform_7, window_bounds = array<i64: 8, 16>}]} {
    %c0 = arith.constant 0 : index
    %c0_0 = arith.constant 0 : index
    %0 = vector.load %arg1[%c0, %c0_0] : memref<8x32xf32, #tpu.memory_space<vmem>>, vector<8x32xf32>
    %1 = arith.truncf %0 : vector<8x32xf32> to vector<8x32xbf16>
    %c0_1 = arith.constant 0 : index
    %c0_2 = arith.constant 0 : index
    %2 = vector.load %arg2[%c0_1, %c0_2] : memref<32x64xbf16, #tpu.memory_space<vmem>>, vector<32x64xbf16>
    %c0_3 = arith.constant 0 : index
    %c0_4 = arith.constant 0 : index
    %3 = vector.load %arg3[%c0_3, %c0_4] : memref<1x64xf32, #tpu.memory_space<vmem>>, vector<1x64xf32>
    %cst = arith.constant dense<0.000000e+00> : vector<8x64xf32>
    %4 = tpu.matmul %1, %2, %cst {dimension_numbers = #tpu.dot_dimension_numbers<[1], [0], [0], [1], [0, 0, 1, 1], [], []>} : vector<8x32xbf16>, vector<32x64xbf16>, vector<8x64xf32> -> vector<8x64xf32>
    %5 = vector.broadcast %3 : vector<1x64xf32> to vector<8x64xf32>
    %6 = arith.addf %4, %5 : vector<8x64xf32>
    %cst_5 = arith.constant 0.000000e+00 : f32
    %7 = vector.broadcast %cst_5 : f32 to vector<8x64xf32>
    %8 = arith.maximumf %6, %7 : vector<8x64xf32>
    %9 = arith.truncf %8 : vector<8x64xf32> to vector<8x64xbf16>
    %c0_6 = arith.constant 0 : index
    %c0_7 = arith.constant 0 : index
    %10 = vector.load %arg4[%c0_6, %c0_7] : memref<64x64xbf16, #tpu.memory_space<vmem>>, vector<64x64xbf16>
    %c0_8 = arith.constant 0 : index
    %c0_9 = arith.constant 0 : index
    %11 = vector.load %arg5[%c0_8, %c0_9] : memref<1x64xf32, #tpu.memory_space<vmem>>, vector<1x64xf32>
    %cst_10 = arith.constant dense<0.000000e+00> : vector<8x64xf32>
    %12 = tpu.matmul %9, %10, %cst_10 {dimension_numbers = #tpu.dot_dimension_numbers<[1], [0], [0], [1], [0, 0, 1, 1], [], []>} : vector<8x64xbf16>, vector<64x64xbf16>, vector<8x64xf32> -> vector<8x64xf32>
    %13 = vector.broadcast %11 : vector<1x64xf32> to vector<8x64xf32>
    %14 = arith.addf %12, %13 : vector<8x64xf32>
    %cst_11 = arith.constant 0.000000e+00 : f32
    %15 = vector.broadcast %cst_11 : f32 to vector<8x64xf32>
    %16 = arith.maximumf %14, %15 : vector<8x64xf32>
    %17 = arith.truncf %16 : vector<8x64xf32> to vector<8x64xbf16>
    %c0_12 = arith.constant 0 : index
    %c0_13 = arith.constant 0 : index
    %18 = vector.load %arg6[%c0_12, %c0_13] : memref<64x16xbf16, #tpu.memory_space<vmem>>, vector<64x16xbf16>
    %c0_14 = arith.constant 0 : index
    %c0_15 = arith.constant 0 : index
    %19 = vector.load %arg7[%c0_14, %c0_15] : memref<1x16xf32, #tpu.memory_space<vmem>>, vector<1x16xf32>
    %cst_16 = arith.constant dense<0.000000e+00> : vector<8x16xf32>
    %20 = tpu.matmul %17, %18, %cst_16 {dimension_numbers = #tpu.dot_dimension_numbers<[1], [0], [0], [1], [0, 0, 1, 1], [], []>} : vector<8x64xbf16>, vector<64x16xbf16>, vector<8x16xf32> -> vector<8x16xf32>
    %21 = vector.broadcast %19 : vector<1x16xf32> to vector<8x16xf32>
    %22 = arith.addf %20, %21 : vector<8x16xf32>
    %c0_17 = arith.constant 0 : index
    %c0_18 = arith.constant 0 : index
    %23 = vector.load %arg8[%c0_17, %c0_18] : memref<8x16xf32, #tpu.memory_space<vmem>>, vector<8x16xf32>
    tpu.vector_store %arg8[%c0_17, %c0_18], %22 {strides = array<i32>} : memref<8x16xf32, #tpu.memory_space<vmem>>, vector<8x16xf32>,
    return
  }
  func.func @transform_0(%arg0: i32) -> (i32, i32) {
    %c0_i32 = arith.constant 0 : i32
    %c0_i32_0 = arith.constant 0 : i32
    return %arg0, %c0_i32 : i32, i32
  }
  func.func @transform_1(%arg0: i32) -> (i32, i32) {
    %c0_i32 = arith.constant 0 : i32
    %c0_i32_0 = arith.constant 0 : i32
    %c0_i32_1 = arith.constant 0 : i32
    return %c0_i32, %c0_i32_0 : i32, i32
  }
  func.func @transform_2(%arg0: i32) -> (i32, i32) {
    %c0_i32 = arith.constant 0 : i32
    %c0_i32_0 = arith.constant 0 : i32
    %c0_i32_1 = arith.constant 0 : i32
    return %c0_i32, %c0_i32_0 : i32, i32
  }
  func.func @transform_3(%arg0: i32) -> (i32, i32) {
    %c0_i32 = arith.constant 0 : i32
    %c0_i32_0 = arith.constant 0 : i32
    %c0_i32_1 = arith.constant 0 : i32
    return %c0_i32, %c0_i32_0 : i32, i32
  }
  func.func @transform_4(%arg0: i32) -> (i32, i32) {
    %c0_i32 = arith.constant 0 : i32
    %c0_i32_0 = arith.constant 0 : i32
    %c0_i32_1 = arith.constant 0 : i32
    return %c0_i32, %c0_i32_0 : i32, i32
  }
  func.func @transform_5(%arg0: i32) -> (i32, i32) {
    %c0_i32 = arith.constant 0 : i32
    %c0_i32_0 = arith.constant 0 : i32
    %c0_i32_1 = arith.constant 0 : i32
    return %c0_i32, %c0_i32_0 : i32, i32
  }
  func.func @transform_6(%arg0: i32) -> (i32, i32) {
    %c0_i32 = arith.constant 0 : i32
    %c0_i32_0 = arith.constant 0 : i32
    %c0_i32_1 = arith.constant 0 : i32
    return %c0_i32, %c0_i32_0 : i32, i32
  }
  func.func @transform_7(%arg0: i32) -> (i32, i32) {
    %c0_i32 = arith.constant 0 : i32
    %c0_i32_0 = arith.constant 0 : i32
    return %arg0, %c0_i32 : i32, i32
  }
}

</mosaic_0001>

<llo_original>
// kernel: tpu_custom_call.1
$region0: #{tpu_custom_call.1}
  #allocation0 [shape = 'u32[]', space=smem, size = 0x4, offset = 0x4, fixed_abs, tag = 'smem constant byte address 0x4 - core index']
  #allocation1 [shape = 'u32[144,128]{1,0:T(1,128)}', space=vmem, size = 0x12000, scoped, tag = 'internal scratch']
  %s0 = inlined_call_operand.hbm [shape: f32[8,32], index: 0, kind: input, shape index: {}]
  %s1 = inlined_call_operand.vmem [shape: bf16[32,64], index: 1, kind: input, shape index: {}]
  %s2 = inlined_call_operand.vmem [shape: f32[1,64], index: 2, kind: input, shape index: {}]
  %s3 = inlined_call_operand.vmem [shape: bf16[64,64], index: 3, kind: input, shape index: {}]
  %s4 = inlined_call_operand.vmem [shape: f32[1,64], index: 4, kind: input, shape index: {}]
  %s5 = inlined_call_operand.vmem [shape: bf16[64,16], index: 5, kind: input, shape index: {}]
  %s6 = inlined_call_operand.vmem [shape: f32[1,16], index: 6, kind: input, shape index: {}]
  %s7 = inlined_call_operand.hbm [shape: f32[8,16], index: 7, kind: output, shape index: {}]
  %s8 = sld [smem:[#allocation0]]
  $region42: #{tpu_custom_call.1} parent=0
    _
  %s10 = ssub.s32 1, %s8
  %s11 = scalar_select 0, %s10, %s8
  $region1: #{tpu_custom_call.1} parent=0
    #allocation2 [shape = 'u8[4096]{0}', space=vmem, size = 0x1000, scoped, tag = 'input window, operand 0, single buffered']
    #allocation3 [shape = 's32[1]{0}', space=sflag, size = 0x4, scoped, tag = 'scoped memory for tpu_custom_call.1']
    #allocation4 [shape = 's32[1]{0}', space=sflag, size = 0x4, scoped, tag = 'scoped memory for tpu_custom_call.1']
    #allocation5 [shape = 'u8[4096]{0}', space=vmem, size = 0x1000, scoped, tag = 'output window, operand 0, single buffered']
    %12 = vsyncpa [#allocation3], 0
    %13 = vsyncpa [#allocation4], 0
    // Predicated region
    $region2: #{tpu_custom_call.1} parent=1 // pred_check
      _
    $region3: #{tpu_custom_call.1} parent=1 // pred_check_branch
      %15 = sbr.rel (0) target = $region5
    $region4: #{tpu_custom_call.1} parent=1 // pred_region
      %s17 = ssub.s32 128, 128
      %18 = vsyncadd [#allocation3], %s17
      %s20 = sshll.u32 [#allocation2], 4
      %s21 = int_to_ptr.vmem [resolvable:$true] %s20
      %23 = dma.hbm_to_vmem [thread:$0]  %s0, 128, %s21, [#allocation3]
    $region5: #{tpu_custom_call.1} parent=1 // pred_fallthru
      _
    // Predicated region
    $region6: #{tpu_custom_call.1} parent=1 // pred_check
      _
    $region7: #{tpu_custom_call.1} parent=1 // pred_check_branch
      %25 = sbr.rel (0) target = $region9
    $region8: #{tpu_custom_call.1} parent=1 // pred_region
      _
    $region9: #{tpu_custom_call.1} parent=1 // pred_fallthru
      _
    // Predicated region
    $region10: #{tpu_custom_call.1} parent=1 // pred_check
      _
    $region11: #{tpu_custom_call.1} parent=1 // pred_check_branch
      %27 = sbr.rel (0) target = $region13
    $region12: #{tpu_custom_call.1} parent=1 // pred_region
      _
    $region13: #{tpu_custom_call.1} parent=1 // pred_fallthru
      _
    // Predicated region
    $region14: #{tpu_custom_call.1} parent=1 // pred_check
      _
    $region15: #{tpu_custom_call.1} parent=1 // pred_check_branch
      %29 = sbr.rel (0) target = $region17
    $region16: #{tpu_custom_call.1} parent=1 // pred_region
      _
    $region17: #{tpu_custom_call.1} parent=1 // pred_fallthru
      _
    // Predicated region
    $region18: #{tpu_custom_call.1} parent=1 // pred_check
      _
    $region19: #{tpu_custom_call.1} parent=1 // pred_check_branch
      %31 = sbr.rel (0) target = $region21
    $region20: #{tpu_custom_call.1} parent=1 // pred_region
      _
    $region21: #{tpu_custom_call.1} parent=1 // pred_fallthru
      _
    // Predicated region
    $region22: #{tpu_custom_call.1} parent=1 // pred_check
      _
    $region23: #{tpu_custom_call.1} parent=1 // pred_check_branch
      %33 = sbr.rel (0) target = $region25
    $region24: #{tpu_custom_call.1} parent=1 // pred_region
      _
    $region25: #{tpu_custom_call.1} parent=1 // pred_fallthru
      _
    // Predicated region
    $region26: #{tpu_custom_call.1} parent=1 // pred_check
      _
    $region27: #{tpu_custom_call.1} parent=1 // pred_check_branch
      %35 = sbr.rel (0) target = $region29
    $region28: #{tpu_custom_call.1} parent=1 // pred_region
      _
    $region29: #{tpu_custom_call.1} parent=1 // pred_fallthru
      _
    // Predicated region
    $region30: #{tpu_custom_call.1} parent=1 // pred_check
      _
    $region31: #{tpu_custom_call.1} parent=1 // pred_check_branch
      %37 = sbr.rel (0) target = $region33
    $region32: #{tpu_custom_call.1} parent=1 // pred_region
      %38 = dma.done [#allocation3], 128
    $region33: #{tpu_custom_call.1} parent=1 // pred_fallthru
      _
    %v40 = vld [vmem:[#allocation2] sm:$0xff]
    %v41 = vpack.c.bf16 %v40, %v40
    %v42 = vld [vmem:[%s1] sm:$0xf]
    %v43 = vld [vmem:[%s1 + $0x4] sm:$0xf]
    %v44 = vld [vmem:[%s1 + $0x8] sm:$0xf]
    %v45 = vld [vmem:[%s1 + $0xc] sm:$0xf]
    %v46 = vld [vmem:[%s2] sm:$0x1]
    %v48 = vlaneseq
    %v49 = vshrl.u32 %v48, 7
    %v50 = vsub.s32 0, %v49
    %v51 = vrot.slane %v46, %v50
    %v57 = vunpack.c.l.b16 %v42
    %v58 = vunpack.c.l.b16 %v43
    %v59 = vunpack.c.l.b16 %v44
    %v60 = vunpack.c.l.b16 %v45
    %v61 = vpack.c.b16 %v58, %v57
    %v62 = vpack.c.b16 %v60, %v59
    %vm65 = vcmask 261120
    %v67 = vsel %vm65, %v41, 0
    %69 = vmatprep.subr.bf16.mxu0 0
    %70 = vmatpush1.bf16.msra.mxu0 %v61
    %71 = vmatprep.subr.bf16.mxu0 0
    %72 = vmatpush1.bf16.msra.mxu0 %v62
    %73 = vmatprep.subr.bf16.mxu0 0
    %74 = vmatpush1.bf16.msra.mxu0 0
    %75 = vmatprep.subr.bf16.mxu0 0
    %76 = vmatpush1.bf16.msra.mxu0 0
    %77 = vmatprep.subr.bf16.mxu0 0
    %78 = vmatpush1.bf16.msra.mxu0 0
    %79 = vmatprep.subr.bf16.mxu0 0
    %80 = vmatpush1.bf16.msra.mxu0 0
    %81 = vmatprep.subr.bf16.mxu0 0
    %82 = vmatpush1.bf16.msra.mxu0 0
    %83 = vmatprep.subr.bf16.mxu0 0
    %84 = vmatpush1.bf16.msra.mxu0 0
    %85 = vmatprep.subr.bf16.mxu0 0
    %86 = vmatpush1.bf16.msra.mxu0 0
    %87 = vmatprep.subr.bf16.mxu0 0
    %88 = vmatpush1.bf16.msra.mxu0 0
    %89 = vmatprep.subr.bf16.mxu0 0
    %90 = vmatpush1.bf16.msra.mxu0 0
    %91 = vmatprep.subr.bf16.mxu0 0
    %92 = vmatpush1.bf16.msra.mxu0 0
    %93 = vmatprep.subr.bf16.mxu0 0
    %94 = vmatpush1.bf16.msra.mxu0 0
    %95 = vmatprep.subr.bf16.mxu0 0
    %96 = vmatpush1.bf16.msra.mxu0 0
    %97 = vmatprep.subr.bf16.mxu0 0
    %98 = vmatpush1.bf16.msra.mxu0 0
    %99 = vmatprep.subr.bf16.mxu0 0
    %100 = vmatpush1.bf16.msra.mxu0 0
    %101 = vmatprep.mubr.bf16.mxu0 0
    %102 = vmatmul.mubr.bf16.gmra.mrb[0].mxu0 %v67
    %v103 = vpop.f32.mrb[0].mxu0
    %v104 = vadd.f32 %v51, %v103
    %v105 = vpop.f32.mrb[0].mxu0
    %v106 = vpop.f32.mrb[0].mxu0
    %v107 = vpop.f32.mrb[0].mxu0
    %108 = vdwg.mxu0
    %v109 = vmax.f32 %v104, 0.0
    %v110 = vpack.c.bf16 %v109, %v109
    %v111 = vld [vmem:[%s3] sm:$0xf]
    %v112 = vld [vmem:[%s3 + $0x4] sm:$0xf]
    %v113 = vld [vmem:[%s3 + $0x8] sm:$0xf]
    %v114 = vld [vmem:[%s3 + $0xc] sm:$0xf]
    %v115 = vld [vmem:[%s3 + $0x10] sm:$0xf]
    %v116 = vld [vmem:[%s3 + $0x14] sm:$0xf]
    %v117 = vld [vmem:[%s3 + $0x18] sm:$0xf]
    %v118 = vld [vmem:[%s3 + $0x1c] sm:$0xf]
    %v119 = vld [vmem:[%s4] sm:$0x1]
    %v121 = vlaneseq
    %v122 = vshrl.u32 %v121, 7
    %v123 = vsub.s32 0, %v122
    %v124 = vrot.slane %v119, %v123
    %v134 = vunpack.c.l.b16 %v111
    %v135 = vunpack.c.l.b16 %v112
    %v136 = vunpack.c.l.b16 %v113
    %v137 = vunpack.c.l.b16 %v114
    %v138 = vunpack.c.l.b16 %v115
    %v139 = vunpack.c.l.b16 %v116
    %v140 = vunpack.c.l.b16 %v117
    %v141 = vunpack.c.l.b16 %v118
    %v142 = vpack.c.b16 %v135, %v134
    %v143 = vpack.c.b16 %v137, %v136
    %v144 = vpack.c.b16 %v139, %v138
    %v145 = vpack.c.b16 %v141, %v140
    %vm150 = vcmask 523264
    %v152 = vsel %vm150, %v110, 0
    %154 = vmatprep.subr.bf16.mxu0 0
    %155 = vmatpush1.bf16.msra.mxu0 %v142
    %156 = vmatprep.subr.bf16.mxu0 0
    %157 = vmatpush1.bf16.msra.mxu0 %v143
    %158 = vmatprep.subr.bf16.mxu0 0
    %159 = vmatpush1.bf16.msra.mxu0 %v144
    %160 = vmatprep.subr.bf16.mxu0 0
    %161 = vmatpush1.bf16.msra.mxu0 %v145
    %162 = vmatprep.subr.bf16.mxu0 0
    %163 = vmatpush1.bf16.msra.mxu0 0
    %164 = vmatprep.subr.bf16.mxu0 0
    %165 = vmatpush1.bf16.msra.mxu0 0
    %166 = vmatprep.subr.bf16.mxu0 0
    %167 = vmatpush1.bf16.msra.mxu0 0
    %168 = vmatprep.subr.bf16.mxu0 0
    %169 = vmatpush1.bf16.msra.mxu0 0
    %170 = vmatprep.subr.bf16.mxu0 0
    %171 = vmatpush1.bf16.msra.mxu0 0
    %172 = vmatprep.subr.bf16.mxu0 0
    %173 = vmatpush1.bf16.msra.mxu0 0
    %174 = vmatprep.subr.bf16.mxu0 0
    %175 = vmatpush1.bf16.msra.mxu0 0
    %176 = vmatprep.subr.bf16.mxu0 0
    %177 = vmatpush1.bf16.msra.mxu0 0
    %178 = vmatprep.subr.bf16.mxu0 0
    %179 = vmatpush1.bf16.msra.mxu0 0
    %180 = vmatprep.subr.bf16.mxu0 0
    %181 = vmatpush1.bf16.msra.mxu0 0
    %182 = vmatprep.subr.bf16.mxu0 0
    %183 = vmatpush1.bf16.msra.mxu0 0
    %184 = vmatprep.subr.bf16.mxu0 0
    %185 = vmatpush1.bf16.msra.mxu0 0
    %186 = vmatprep.mubr.bf16.mxu0 0
    %187 = vmatmul.mubr.bf16.gmra.mrb[0].mxu0 %v152
    %v188 = vpop.f32.mrb[0].mxu0
    %v189 = vadd.f32 %v124, %v188
    %v190 = vpop.f32.mrb[0].mxu0
    %v191 = vpop.f32.mrb[0].mxu0
    %v192 = vpop.f32.mrb[0].mxu0
    %193 = vdwg.mxu0
    %v194 = vmax.f32 %v189, 0.0
    %v195 = vpack.c.bf16 %v194, %v194
    %v196 = vld [vmem:[%s5] sm:$0xf]
    %v197 = vld [vmem:[%s5 + $0x4] sm:$0xf]
    %v198 = vld [vmem:[%s5 + $0x8] sm:$0xf]
    %v199 = vld [vmem:[%s5 + $0xc] sm:$0xf]
    %v200 = vld [vmem:[%s5 + $0x10] sm:$0xf]
    %v201 = vld [vmem:[%s5 + $0x14] sm:$0xf]
    %v202 = vld [vmem:[%s5 + $0x18] sm:$0xf]
    %v203 = vld [vmem:[%s5 + $0x1c] sm:$0xf]
    %v204 = vld [vmem:[%s6] sm:$0x1]
    %v206 = vlaneseq
    %v207 = vshrl.u32 %v206, 7
    %v208 = vsub.s32 0, %v207
    %v209 = vrot.slane %v204, %v208
    %v219 = vunpack.c.l.b16 %v196
    %v220 = vunpack.c.l.b16 %v197
    %v221 = vunpack.c.l.b16 %v198
    %v222 = vunpack.c.l.b16 %v199
    %v223 = vunpack.c.l.b16 %v200
    %v224 = vunpack.c.l.b16 %v201
    %v225 = vunpack.c.l.b16 %v202
    %v226 = vunpack.c.l.b16 %v203
    %v227 = vpack.c.b16 %v220, %v219
    %v228 = vpack.c.b16 %v222, %v221
    %v229 = vpack.c.b16 %v224, %v223
    %v230 = vpack.c.b16 %v226, %v225
    %v236 = vsel %vm150, %v195, 0
    %238 = vmatprep.subr.bf16.mxu0 0
    %239 = vmatpush1.bf16.msra.mxu0 %v227
    %240 = vmatprep.subr.bf16.mxu0 0
    %241 = vmatpush1.bf16.msra.mxu0 %v228
    %242 = vmatprep.subr.bf16.mxu0 0
    %243 = vmatpush1.bf16.msra.mxu0 %v229
    %244 = vmatprep.subr.bf16.mxu0 0
    %245 = vmatpush1.bf16.msra.mxu0 %v230
    %246 = vmatprep.subr.bf16.mxu0 0
    %247 = vmatpush1.bf16.msra.mxu0 0
    %248 = vmatprep.subr.bf16.mxu0 0
    %249 = vmatpush1.bf16.msra.mxu0 0
    %250 = vmatprep.subr.bf16.mxu0 0
    %251 = vmatpush1.bf16.msra.mxu0 0
    %252 = vmatprep.subr.bf16.mxu0 0
    %253 = vmatpush1.bf16.msra.mxu0 0
    %254 = vmatprep.subr.bf16.mxu0 0
    %255 = vmatpush1.bf16.msra.mxu0 0
    %256 = vmatprep.subr.bf16.mxu0 0
    %257 = vmatpush1.bf16.msra.mxu0 0
    %258 = vmatprep.subr.bf16.mxu0 0
    %259 = vmatpush1.bf16.msra.mxu0 0
    %260 = vmatprep.subr.bf16.mxu0 0
    %261 = vmatpush1.bf16.msra.mxu0 0
    %262 = vmatprep.subr.bf16.mxu0 0
    %263 = vmatpush1.bf16.msra.mxu0 0
    %264 = vmatprep.subr.bf16.mxu0 0
    %265 = vmatpush1.bf16.msra.mxu0 0
    %266 = vmatprep.subr.bf16.mxu0 0
    %267 = vmatpush1.bf16.msra.mxu0 0
    %268 = vmatprep.subr.bf16.mxu0 0
    %269 = vmatpush1.bf16.msra.mxu0 0
    %270 = vmatprep.mubr.bf16.mxu0 0
    %271 = vmatmul.mubr.bf16.gmra.mrb[0].mxu0 %v236
    %v272 = vpop.f32.mrb[0].mxu0
    %v273 = vadd.f32 %v209, %v272
    %v274 = vpop.f32.mrb[0].mxu0
    %v275 = vpop.f32.mrb[0].mxu0
    %v276 = vpop.f32.mrb[0].mxu0
    %277 = vdwg.mxu0
    %vm278 = vcmask 130048
    %279 = vst.msk [vmem:[#allocation5] sm:$0xff] %vm278, %v273
    // Predicated region
    $region34: #{tpu_custom_call.1} parent=1 // pred_check
      _
    $region35: #{tpu_custom_call.1} parent=1 // pred_check_branch
      %281 = sbr.rel (0) target = $region37
    $region36: #{tpu_custom_call.1} parent=1 // pred_region
      %s283 = ssub.s32 128, 128
      %284 = vsyncadd [#allocation4], %s283
      %s286 = sshll.u32 [#allocation5], 4
      %s287 = int_to_ptr.vmem [resolvable:$true] %s286
      %289 = dma.vmem_to_hbm [thread:$0]  %s287, 128, %s7, [#allocation4]
    $region37: #{tpu_custom_call.1} parent=1 // pred_fallthru
      _
    // Predicated region
    $region38: #{tpu_custom_call.1} parent=1 // pred_check
      _
    $region39: #{tpu_custom_call.1} parent=1 // pred_check_branch
      %291 = sbr.rel (0) target = $region41
    $region40: #{tpu_custom_call.1} parent=1 // pred_region
      %292 = dma.done [#allocation4], 128
    $region41: #{tpu_custom_call.1} parent=1 // pred_fallthru
      _
    %293 = vsyncpa [#allocation3], 1
    %294 = vsyncpa [#allocation4], 1

</llo_original>
